<compile_context>
chip_gen: v7x
topology: tpu7x:2x2x1
jax: 0.10.0
libtpu: 0.0.40
codegen_flags: <defaults>
</compile_context>

<pallas_src>
import functools

import jax
import jax.numpy as jnp
from jax.experimental import pallas as pl
from jax.experimental.pallas import tpu as pltpu

# Constants mirroring wtpsplit.utils.Constants
NEWLINE_INDEX = 0
AUX_OFFSET = 1
LOSS_MARGIN = 0.5  # Model default


def _round_up(x, m):
    return ((x + m - 1) // m) * m


def model_kernel(ids_ref, labels_ref, emb_ref, w_ref, b_ref,
                 logits_ref, bce_ref, msum_ref, *, loss_margin):
    """One tile of TM tokens: embedding (one-hot MXU matmul) -> dense head ->
    masked BCE-with-logits partial sums, all fused."""
    tm = ids_ref.shape[1]
    v_pad = emb_ref.shape[0]

    ids = ids_ref[0]          # [TM, 1] int32 token ids
    labs = labels_ref[0]      # [TM, 1] int32 labels

    # ---- backbone embedding: one-hot(ids) @ emb_table on the MXU ----
    iota = jax.lax.broadcasted_iota(jnp.int32, (tm, v_pad), 1)
    onehot = jnp.where(iota == ids, 1.0, 0.0).astype(jnp.bfloat16)   # [TM, V_pad]
    hidden = jnp.dot(onehot, emb_ref[...],
                     preferred_element_type=jnp.float32)             # [TM, H] (exact bf16 rows)

    # ---- classification head: [TM, H] bf16 @ [H, L_pad] bf16 -> f32 logits ----
    logits = jnp.dot(hidden.astype(jnp.bfloat16), w_ref[...],
                     preferred_element_type=jnp.float32) + b_ref[...]
    logits_ref[...] = logits

    # ---- sentence (newline) BCE-with-logits, masked, f32 on the VPU/EUP ----
    mask = jnp.where(ids != 0, 1.0, 0.0)                             # [TM, 1]
    y = (0.5 - loss_margin
         + jnp.where(labs == NEWLINE_INDEX + 1, 1.0, 0.0) * (2.0 * loss_margin))
    x = logits[:, NEWLINE_INDEX:NEWLINE_INDEX + 1]                   # [TM, 1]
    # numerically-stable BCEWithLogits: max(x,0) - x*y + log1p(exp(-|x|))
    bce = jnp.maximum(x, 0.0) - x * y + jnp.log1p(jnp.exp(-jnp.abs(x)))
    bce_ref[...] = jnp.reshape(jnp.sum(bce * mask), (1, 1, 1))
    msum_ref[...] = jnp.reshape(jnp.sum(mask), (1, 1, 1))


def model_forward(input_ids, labels, emb_table, w, b, *, loss_margin=LOSS_MARGIN):
    """Returns {'logits': [B, S, L], 'loss': scalar} like Model.forward."""
    B, S = input_ids.shape
    V, H = emb_table.shape
    L = w.shape[1]
    N = B * S

    # ---- tiling over the token dimension ----
    TM = min(512, _round_up(N, 128))        # rows per tile, 128-aligned
    N_pad = _round_up(N, TM)
    G = N_pad // TM
    L_pad = _round_up(L, 128)               # lane-dense logits output
    V_pad = _round_up(V, 128)               # lane-dense one-hot contraction dim
    pad = N_pad - N

    ids_flat = input_ids.reshape(N).astype(jnp.int32)
    labels_flat = labels.reshape(N).astype(jnp.int32)
    # Padded rows use id 0 -> mask 0 -> they never contribute to the loss.
    ids_p = jnp.pad(ids_flat, (0, pad)).reshape(G, TM, 1)
    labels_p = jnp.pad(labels_flat, (0, pad)).reshape(G, TM, 1)

    emb_p = jnp.pad(emb_table, ((0, V_pad - V), (0, 0))).astype(jnp.bfloat16)
    w_p = jnp.pad(w, ((0, 0), (0, L_pad - L))).astype(jnp.bfloat16)
    b_p = jnp.pad(b, (0, L_pad - L)).reshape(1, L_pad).astype(jnp.float32)

    # ---- VMEM budget: double-buffered tiles + resident weights + temps ----
    tile_bytes = (2 * TM * 128 * 4          # ids + labels tiles (lane-padded int32)
                  + TM * L_pad * 4          # logits tile (f32)
                  + TM * V_pad * 2          # one-hot temp (bf16)
                  + TM * H * 4              # hidden temp (f32)
                  + 3 * 4096)               # per-tile partial-sum blocks + bias
    weight_bytes = (V_pad * _round_up(H, 128) * 2   # emb table (bf16, lane-padded)
                    + H * L_pad * 2 + 4096)         # head W + bias
    vmem_limit = int(min(max(2 * tile_bytes + 2 * weight_bytes + (2 << 20), 16 << 20),
                         48 << 20))

    cost = pl.CostEstimate(
        flops=2 * N_pad * V_pad * H + 2 * N_pad * H * L_pad + 16 * N_pad,
        transcendentals=2 * N_pad,
        bytes_accessed=(2 * N_pad * 4 + V_pad * H * 2 + H * L_pad * 2 + L_pad * 4
                        + N_pad * L_pad * 4 + 2 * G * 4),
    )

    kernel = functools.partial(model_kernel, loss_margin=float(loss_margin))

    logits_pad, bce_partials, mask_partials = pl.pallas_call(
        kernel,
        grid_spec=pltpu.PrefetchScalarGridSpec(
            num_scalar_prefetch=0,
            grid=(G,),
            in_specs=[
                pl.BlockSpec((1, TM, 1), lambda i: (i, 0, 0)),  # token ids tile
                pl.BlockSpec((1, TM, 1), lambda i: (i, 0, 0)),  # labels tile
                pl.BlockSpec((V_pad, H), lambda i: (0, 0)),     # emb table (resident)
                pl.BlockSpec((H, L_pad), lambda i: (0, 0)),     # head weight (resident)
                pl.BlockSpec((1, L_pad), lambda i: (0, 0)),     # head bias (resident)
            ],
            out_specs=(
                pl.BlockSpec((TM, L_pad), lambda i: (i, 0)),    # logits tile
                pl.BlockSpec((1, 1, 1), lambda i: (i, 0, 0)),   # per-tile BCE sum
                pl.BlockSpec((1, 1, 1), lambda i: (i, 0, 0)),   # per-tile mask sum
            ),
        ),
        out_shape=(
            jax.ShapeDtypeStruct((N_pad, L_pad), jnp.float32),
            jax.ShapeDtypeStruct((G, 1, 1), jnp.float32),
            jax.ShapeDtypeStruct((G, 1, 1), jnp.float32),
        ),
        compiler_params=pltpu.CompilerParams(
            dimension_semantics=("parallel",),
            vmem_limit_bytes=vmem_limit,
        ),
        cost_estimate=cost,
    )(ids_p, labels_p, emb_p, w_p, b_p)

    loss = jnp.sum(bce_partials) / jnp.sum(mask_partials)
    logits = logits_pad[:N, :L].reshape(B, S, L)
    return {"logits": logits, "loss": loss}


def reference_forward(input_ids, labels, emb_table, w, b, *, loss_margin=LOSS_MARGIN):
    """Pure-JAX f32 reference matching the PyTorch semantics."""
    B, S = input_ids.shape
    hidden = jnp.take(emb_table, input_ids.reshape(-1), axis=0).astype(jnp.float32)
    logits = hidden @ w + b[None, :]
    x = logits[:, NEWLINE_INDEX]
    y = (0.5 - loss_margin
         + (labels.reshape(-1) == NEWLINE_INDEX + 1).astype(jnp.float32)
         * loss_margin * 2.0)
    mask = (input_ids.reshape(-1) != 0).astype(jnp.float32)
    bce = jnp.maximum(x, 0.0) - x * y + jnp.log1p(jnp.exp(-jnp.abs(x)))
    loss = jnp.sum(bce * mask) / jnp.sum(mask)
    return {"logits": logits.reshape(B, S, -1), "loss": loss}


if __name__ == "__main__":
    B, S, H, L, VOCAB = 2, 16, 32, 8, 64

    key = jax.random.PRNGKey(0)
    k_ids, k_lab, k_emb, k_w, k_b = jax.random.split(key, 5)

    # token ids with some padding (id 0)
    input_ids = jax.random.randint(k_ids, (B, S), 0, VOCAB, dtype=jnp.int32)
    input_ids = input_ids.at[:, -3:].set(0)  # simulate padded tail
    # labels: 0 = none, 1 = newline (NEWLINE_INDEX + 1), >1 = aux classes
    labels = jax.random.randint(k_lab, (B, S), 0, L, dtype=jnp.int32)

    # deterministic synthetic backbone parameters
    emb_table = jax.random.normal(k_emb, (VOCAB, H), dtype=jnp.float32) * 0.1
    w = jax.random.normal(k_w, (H, L), dtype=jnp.float32) * 0.1
    b = jax.random.normal(k_b, (L,), dtype=jnp.float32) * 0.1

    out = model_forward(input_ids, labels, emb_table, w, b)
    jax.block_until_ready(out["loss"])

    ref = reference_forward(input_ids, labels, emb_table, w, b)
    # bf16 MXU inputs (f32 accumulation) vs the pure-f32 reference: ~1e-3 level.
    assert jnp.allclose(out["logits"], ref["logits"], atol=1e-2, rtol=1e-2)
    assert jnp.allclose(out["loss"], ref["loss"], atol=1e-2, rtol=1e-2)

    print("KERNEL_OK")
</pallas_src>

<mosaic_0001>
module attributes {stable_mosaic.version = 11 : i64} {
  func.func @model_kernel(%arg0: i32, %arg1: memref<1x128x1xi32, #tpu.memory_space<vmem>>, %arg2: memref<1x128x1xi32, #tpu.memory_space<vmem>>, %arg3: memref<128x32xbf16, #tpu.memory_space<vmem>>, %arg4: memref<32x128xbf16, #tpu.memory_space<vmem>>, %arg5: memref<1x128xf32, #tpu.memory_space<vmem>>, %arg6: memref<128x128xf32, #tpu.memory_space<vmem>>, %arg7: memref<1x1x1xf32, #tpu.memory_space<vmem>>, %arg8: memref<1x1x1xf32, #tpu.memory_space<vmem>>) attributes {dimension_semantics = [#tpu.dimension_semantics<parallel>], iteration_bounds = array<i64: 1>, scalar_prefetch = 0 : i64, scratch_operands = 0 : i64, tpu.core_type = #tpu.core_type<tc>, window_params = [{transform_indices = @transform_0, window_bounds = array<i64: 1, 128, 1>}, {transform_indices = @transform_1, window_bounds = array<i64: 1, 128, 1>}, {pipeline_mode = #tpu.pipeline_mode<synchronous>, transform_indices = @transform_2, window_bounds = array<i64: 128, 32>}, {pipeline_mode = #tpu.pipeline_mode<synchronous>, transform_indices = @transform_3, window_bounds = array<i64: 32, 128>}, {pipeline_mode = #tpu.pipeline_mode<synchronous>, transform_indices = @transform_4, window_bounds = array<i64: 1, 128>}, {transform_indices = @transform_5, window_bounds = array<i64: 128, 128>}, {transform_indices = @transform_6, window_bounds = array<i64: 1, 1, 1>}, {transform_indices = @transform_7, window_bounds = array<i64: 1, 1, 1>}]} {
    %c0 = arith.constant 0 : index
    %c0_0 = arith.constant 0 : index
    %c0_1 = arith.constant 0 : index
    %0 = vector.load %arg1[%c0, %c0_0, %c0_1] : memref<1x128x1xi32, #tpu.memory_space<vmem>>, vector<1x128x1xi32>
    %1 = vector.shape_cast %0 : vector<1x128x1xi32> to vector<128x1xi32>
    %c0_2 = arith.constant 0 : index
    %c0_3 = arith.constant 0 : index
    %c0_4 = arith.constant 0 : index
    %2 = vector.load %arg2[%c0_2, %c0_3, %c0_4] : memref<1x128x1xi32, #tpu.memory_space<vmem>>, vector<1x128x1xi32>
    %3 = vector.shape_cast %2 : vector<1x128x1xi32> to vector<128x1xi32>
    %4 = tpu.iota {dimensions = array<i32: 1>} : vector<128x128xi32>
    %5 = vector.broadcast %1 : vector<128x1xi32> to vector<128x128xi32>
    %6 = arith.cmpi eq, %4, %5 : vector<128x128xi32>
    %cst = arith.constant 1.000000e+00 : f32
    %cst_5 = arith.constant 0.000000e+00 : f32
    %7 = vector.broadcast %cst : f32 to vector<128x128xf32>
    %8 = vector.broadcast %cst_5 : f32 to vector<128x128xf32>
    %9 = arith.select %6, %7, %8 : vector<128x128xi1>, vector<128x128xf32>
    %10 = arith.truncf %9 : vector<128x128xf32> to vector<128x128xbf16>
    %c0_6 = arith.constant 0 : index
    %c0_7 = arith.constant 0 : index
    %11 = vector.load %arg3[%c0_6, %c0_7] : memref<128x32xbf16, #tpu.memory_space<vmem>>, vector<128x32xbf16>
    %cst_8 = arith.constant dense<0.000000e+00> : vector<128x32xf32>
    %12 = tpu.matmul %10, %11, %cst_8 {dimension_numbers = #tpu.dot_dimension_numbers<[1], [0], [0], [1], [0, 0, 1, 1], [], []>} : vector<128x128xbf16>, vector<128x32xbf16>, vector<128x32xf32> -> vector<128x32xf32>
    %13 = arith.truncf %12 : vector<128x32xf32> to vector<128x32xbf16>
    %c0_9 = arith.constant 0 : index
    %c0_10 = arith.constant 0 : index
    %14 = vector.load %arg4[%c0_9, %c0_10] : memref<32x128xbf16, #tpu.memory_space<vmem>>, vector<32x128xbf16>
    %cst_11 = arith.constant dense<0.000000e+00> : vector<128x128xf32>
    %15 = tpu.matmul %13, %14, %cst_11 {dimension_numbers = #tpu.dot_dimension_numbers<[1], [0], [0], [1], [0, 0, 1, 1], [], []>} : vector<128x32xbf16>, vector<32x128xbf16>, vector<128x128xf32> -> vector<128x128xf32>
    %c0_12 = arith.constant 0 : index
    %c0_13 = arith.constant 0 : index
    %16 = vector.load %arg5[%c0_12, %c0_13] : memref<1x128xf32, #tpu.memory_space<vmem>>, vector<1x128xf32>
    %17 = vector.broadcast %16 : vector<1x128xf32> to vector<128x128xf32>
    %18 = arith.addf %15, %17 : vector<128x128xf32>
    %c0_14 = arith.constant 0 : index
    %c0_15 = arith.constant 0 : index
    %19 = vector.load %arg6[%c0_14, %c0_15] : memref<128x128xf32, #tpu.memory_space<vmem>>, vector<128x128xf32>
    tpu.vector_store %arg6[%c0_14, %c0_15], %18 {strides = array<i32>} : memref<128x128xf32, #tpu.memory_space<vmem>>, vector<128x128xf32>,
    %c0_i32 = arith.constant 0 : i32
    %20 = vector.broadcast %c0_i32 : i32 to vector<128x1xi32>
    %21 = arith.cmpi ne, %1, %20 : vector<128x1xi32>
    %cst_16 = arith.constant 1.000000e+00 : f32
    %cst_17 = arith.constant 0.000000e+00 : f32
    %22 = vector.broadcast %cst_16 : f32 to vector<128x1xf32>
    %23 = vector.broadcast %cst_17 : f32 to vector<128x1xf32>
    %24 = arith.select %21, %22, %23 : vector<128x1xi1>, vector<128x1xf32>
    %c1_i32 = arith.constant 1 : i32
    %25 = vector.broadcast %c1_i32 : i32 to vector<128x1xi32>
    %26 = arith.cmpi eq, %3, %25 : vector<128x1xi32>
    %cst_18 = arith.constant 1.000000e+00 : f32
    %cst_19 = arith.constant 0.000000e+00 : f32
    %27 = vector.broadcast %cst_18 : f32 to vector<128x1xf32>
    %28 = vector.broadcast %cst_19 : f32 to vector<128x1xf32>
    %29 = arith.select %26, %27, %28 : vector<128x1xi1>, vector<128x1xf32>
    %cst_20 = arith.constant 1.000000e+00 : f32
    %30 = vector.broadcast %cst_20 : f32 to vector<128x1xf32>
    %31 = arith.mulf %29, %30 : vector<128x1xf32>
    %cst_21 = arith.constant 0.000000e+00 : f32
    %32 = vector.broadcast %cst_21 : f32 to vector<128x1xf32>
    %33 = arith.addf %32, %31 : vector<128x1xf32>
    %34 = vector.extract_strided_slice %18 {offsets = [0, 0], sizes = [128, 1], strides = [1, 1]} : vector<128x128xf32> to vector<128x1xf32>
    %cst_22 = arith.constant 0.000000e+00 : f32
    %35 = vector.broadcast %cst_22 : f32 to vector<128x1xf32>
    %36 = arith.maximumf %34, %35 : vector<128x1xf32>
    %37 = arith.mulf %34, %33 : vector<128x1xf32>
    %38 = arith.subf %36, %37 : vector<128x1xf32>
    %39 = math.absf %34 : vector<128x1xf32>
    %cst_23 = arith.constant 0.000000e+00 : f32
    %40 = vector.broadcast %cst_23 : f32 to vector<128x1xf32>
    %41 = arith.subf %40, %39 : vector<128x1xf32>
    %42 = math.exp %41 : vector<128x1xf32>
    %43 = math.log1p %42 : vector<128x1xf32>
    %44 = arith.addf %38, %43 : vector<128x1xf32>
    %45 = arith.mulf %44, %24 : vector<128x1xf32>
    %46 = vector.shape_cast %45 : vector<128x1xf32> to vector<1x128x1xf32>
    %cst_24 = arith.constant dense<0.000000e+00> : vector<1xf32>
    %47 = vector.multi_reduction <add>, %46, %cst_24 [1, 2] : vector<1x128x1xf32> to vector<1xf32>
    %48 = vector.shape_cast %47 : vector<1xf32> to vector<1x1x1xf32>
    %49 = vector.extract %48[0, 0, 0] : f32 from vector<1x1x1xf32>
    %50 = vector.broadcast %49 : f32 to vector<1x1x1xf32>
    %c0_25 = arith.constant 0 : index
    %c0_26 = arith.constant 0 : index
    %c0_27 = arith.constant 0 : index
    %51 = vector.load %arg7[%c0_25, %c0_26, %c0_27] : memref<1x1x1xf32, #tpu.memory_space<vmem>>, vector<1x1x1xf32>
    tpu.vector_store %arg7[%c0_25, %c0_26, %c0_27], %50 {strides = array<i32>} : memref<1x1x1xf32, #tpu.memory_space<vmem>>, vector<1x1x1xf32>,
    %52 = vector.shape_cast %24 : vector<128x1xf32> to vector<1x128x1xf32>
    %cst_28 = arith.constant dense<0.000000e+00> : vector<1xf32>
    %53 = vector.multi_reduction <add>, %52, %cst_28 [1, 2] : vector<1x128x1xf32> to vector<1xf32>
    %54 = vector.shape_cast %53 : vector<1xf32> to vector<1x1x1xf32>
    %55 = vector.extract %54[0, 0, 0] : f32 from vector<1x1x1xf32>
    %56 = vector.broadcast %55 : f32 to vector<1x1x1xf32>
    %c0_29 = arith.constant 0 : index
    %c0_30 = arith.constant 0 : index
    %c0_31 = arith.constant 0 : index
    %57 = vector.load %arg8[%c0_29, %c0_30, %c0_31] : memref<1x1x1xf32, #tpu.memory_space<vmem>>, vector<1x1x1xf32>
    tpu.vector_store %arg8[%c0_29, %c0_30, %c0_31], %56 {strides = array<i32>} : memref<1x1x1xf32, #tpu.memory_space<vmem>>, vector<1x1x1xf32>,
    return
  }
  func.func @transform_0(%arg0: i32) -> (i32, i32, i32) {
    %c0_i32 = arith.constant 0 : i32
    %c0_i32_0 = arith.constant 0 : i32
    %c0_i32_1 = arith.constant 0 : i32
    return %arg0, %c0_i32, %c0_i32_0 : i32, i32, i32
  }
  func.func @transform_1(%arg0: i32) -> (i32, i32, i32) {
    %c0_i32 = arith.constant 0 : i32
    %c0_i32_0 = arith.constant 0 : i32
    %c0_i32_1 = arith.constant 0 : i32
    return %arg0, %c0_i32, %c0_i32_0 : i32, i32, i32
  }
  func.func @transform_2(%arg0: i32) -> (i32, i32) {
    %c0_i32 = arith.constant 0 : i32
    %c0_i32_0 = arith.constant 0 : i32
    %c0_i32_1 = arith.constant 0 : i32
    return %c0_i32, %c0_i32_0 : i32, i32
  }
  func.func @transform_3(%arg0: i32) -> (i32, i32) {
    %c0_i32 = arith.constant 0 : i32
    %c0_i32_0 = arith.constant 0 : i32
    %c0_i32_1 = arith.constant 0 : i32
    return %c0_i32, %c0_i32_0 : i32, i32
  }
  func.func @transform_4(%arg0: i32) -> (i32, i32) {
    %c0_i32 = arith.constant 0 : i32
    %c0_i32_0 = arith.constant 0 : i32
    %c0_i32_1 = arith.constant 0 : i32
    return %c0_i32, %c0_i32_0 : i32, i32
  }
  func.func @transform_5(%arg0: i32) -> (i32, i32) {
    %c0_i32 = arith.constant 0 : i32
    %c0_i32_0 = arith.constant 0 : i32
    return %arg0, %c0_i32 : i32, i32
  }
  func.func @transform_6(%arg0: i32) -> (i32, i32, i32) {
    %c0_i32 = arith.constant 0 : i32
    %c0_i32_0 = arith.constant 0 : i32
    %c0_i32_1 = arith.constant 0 : i32
    return %arg0, %c0_i32, %c0_i32_0 : i32, i32, i32
  }
  func.func @transform_7(%arg0: i32) -> (i32, i32, i32) {
    %c0_i32 = arith.constant 0 : i32
    %c0_i32_0 = arith.constant 0 : i32
    %c0_i32_1 = arith.constant 0 : i32
    return %arg0, %c0_i32, %c0_i32_0 : i32, i32, i32
  }
}

</mosaic_0001>

<llo_original>
// kernel: tpu_custom_call.1
$region0: #{tpu_custom_call.1}
  #allocation0 [shape = 'u32[]', space=smem, size = 0x4, offset = 0x4, fixed_abs, tag = 'smem constant byte address 0x4 - core index']
  #allocation1 [shape = 'u32[144,128]{1,0:T(1,128)}', space=vmem, size = 0x12000, scoped, tag = 'internal scratch']
  %s0 = inlined_call_operand.vmem [shape: s32[1,128,1], index: 0, kind: input, shape index: {}]
  %s1 = inlined_call_operand.vmem [shape: s32[1,128,1], index: 1, kind: input, shape index: {}]
  %s2 = inlined_call_operand.vmem [shape: bf16[128,32], index: 2, kind: input, shape index: {}]
  %s3 = inlined_call_operand.vmem [shape: bf16[32,128], index: 3, kind: input, shape index: {}]
  %s4 = inlined_call_operand.vmem [shape: f32[1,128], index: 4, kind: input, shape index: {}]
  %s5 = inlined_call_operand.hbm [shape: f32[128,128], index: 5, kind: output, shape index: {0}]
  %s6 = inlined_call_operand.hbm [shape: f32[1,1,1], index: 6, kind: output, shape index: {1}]
  %s7 = inlined_call_operand.hbm [shape: f32[1,1,1], index: 7, kind: output, shape index: {2}]
  %8 = xla_tuple %s5, %s6, %s7
  %s9 = sld [smem:[#allocation0]]
  $region46: #{tpu_custom_call.1} parent=0
    _
  %s11 = ssub.s32 1, %s9
  %s12 = scalar_select 0, %s11, %s9
  $region1: #{tpu_custom_call.1} parent=0
    #allocation2 [shape = 'u8[65536]{0}', space=vmem, size = 0x10000, scoped, tag = 'output window, operand 0, single buffered']
    #allocation3 [shape = 's32[1]{0}', space=sflag, size = 0x4, scoped, tag = 'scoped memory for tpu_custom_call.1']
    #allocation4 [shape = 'u8[512]{0}', space=vmem, size = 0x400, scoped, tag = 'output window, operand 1, single buffered']
    #allocation5 [shape = 's32[1]{0}', space=sflag, size = 0x4, scoped, tag = 'scoped memory for tpu_custom_call.1']
    #allocation6 [shape = 'u8[512]{0}', space=vmem, size = 0x400, scoped, tag = 'output window, operand 2, single buffered']
    %13 = vsyncpa [#allocation3], 0
    %14 = vsyncpa [#allocation5], 0
    // Predicated region
    $region2: #{tpu_custom_call.1} parent=1 // pred_check
      _
    $region3: #{tpu_custom_call.1} parent=1 // pred_check_branch
      %16 = sbr.rel (0) target = $region5
    $region4: #{tpu_custom_call.1} parent=1 // pred_region
      _
    $region5: #{tpu_custom_call.1} parent=1 // pred_fallthru
      _
    // Predicated region
    $region6: #{tpu_custom_call.1} parent=1 // pred_check
      _
    $region7: #{tpu_custom_call.1} parent=1 // pred_check_branch
      %18 = sbr.rel (0) target = $region9
    $region8: #{tpu_custom_call.1} parent=1 // pred_region
      _
    $region9: #{tpu_custom_call.1} parent=1 // pred_fallthru
      _
    // Predicated region
    $region10: #{tpu_custom_call.1} parent=1 // pred_check
      _
    $region11: #{tpu_custom_call.1} parent=1 // pred_check_branch
      %20 = sbr.rel (0) target = $region13
    $region12: #{tpu_custom_call.1} parent=1 // pred_region
      _
    $region13: #{tpu_custom_call.1} parent=1 // pred_fallthru
      _
    // Predicated region
    $region14: #{tpu_custom_call.1} parent=1 // pred_check
      _
    $region15: #{tpu_custom_call.1} parent=1 // pred_check_branch
      %22 = sbr.rel (0) target = $region17
    $region16: #{tpu_custom_call.1} parent=1 // pred_region
      _
    $region17: #{tpu_custom_call.1} parent=1 // pred_fallthru
      _
    // Predicated region
    $region18: #{tpu_custom_call.1} parent=1 // pred_check
      _
    $region19: #{tpu_custom_call.1} parent=1 // pred_check_branch
      %24 = sbr.rel (0) target = $region21
    $region20: #{tpu_custom_call.1} parent=1 // pred_region
      _
    $region21: #{tpu_custom_call.1} parent=1 // pred_fallthru
      _
    %v26 = vld [vmem:[%s0] sm:$0xff]
    %v27 = vld [vmem:[%s0 + $0x8] sm:$0xff]
    %v28 = vld [vmem:[%s0 + $0x10] sm:$0xff]
    %v29 = vld [vmem:[%s0 + $0x18] sm:$0xff]
    %v30 = vld [vmem:[%s0 + $0x20] sm:$0xff]
    %v31 = vld [vmem:[%s0 + $0x28] sm:$0xff]
    %v32 = vld [vmem:[%s0 + $0x30] sm:$0xff]
    %v33 = vld [vmem:[%s0 + $0x38] sm:$0xff]
    %v34 = vld [vmem:[%s0 + $0x40] sm:$0xff]
    %v35 = vld [vmem:[%s0 + $0x48] sm:$0xff]
    %v36 = vld [vmem:[%s0 + $0x50] sm:$0xff]
    %v37 = vld [vmem:[%s0 + $0x58] sm:$0xff]
    %v38 = vld [vmem:[%s0 + $0x60] sm:$0xff]
    %v39 = vld [vmem:[%s0 + $0x68] sm:$0xff]
    %v40 = vld [vmem:[%s0 + $0x70] sm:$0xff]
    %v41 = vld [vmem:[%s0 + $0x78] sm:$0xff]
    %v42 = vld [vmem:[%s1] sm:$0xff]
    %v43 = vld [vmem:[%s1 + $0x8] sm:$0xff]
    %v44 = vld [vmem:[%s1 + $0x10] sm:$0xff]
    %v45 = vld [vmem:[%s1 + $0x18] sm:$0xff]
    %v46 = vld [vmem:[%s1 + $0x20] sm:$0xff]
    %v47 = vld [vmem:[%s1 + $0x28] sm:$0xff]
    %v48 = vld [vmem:[%s1 + $0x30] sm:$0xff]
    %v49 = vld [vmem:[%s1 + $0x38] sm:$0xff]
    %v50 = vld [vmem:[%s1 + $0x40] sm:$0xff]
    %v51 = vld [vmem:[%s1 + $0x48] sm:$0xff]
    %v52 = vld [vmem:[%s1 + $0x50] sm:$0xff]
    %v53 = vld [vmem:[%s1 + $0x58] sm:$0xff]
    %v54 = vld [vmem:[%s1 + $0x60] sm:$0xff]
    %v55 = vld [vmem:[%s1 + $0x68] sm:$0xff]
    %v56 = vld [vmem:[%s1 + $0x70] sm:$0xff]
    %v57 = vld [vmem:[%s1 + $0x78] sm:$0xff]
    %v58 = vlaneseq
    %v59 = vand.u32 %v58, 127
    %60 = vset.pattern.permute.xlu0 0
    %61 = vperm.xlu0 %60, %v26
    %v62 = vpop.permute.xlu0 %61
    %63 = vset.pattern.permute.xlu0 0
    %64 = vperm.xlu0 %63, %v27
    %v65 = vpop.permute.xlu0 %64
    %66 = vset.pattern.permute.xlu0 0
    %67 = vperm.xlu0 %66, %v28
    %v68 = vpop.permute.xlu0 %67
    %69 = vset.pattern.permute.xlu0 0
    %70 = vperm.xlu0 %69, %v29
    %v71 = vpop.permute.xlu0 %70
    %72 = vset.pattern.permute.xlu0 0
    %73 = vperm.xlu0 %72, %v30
    %v74 = vpop.permute.xlu0 %73
    %75 = vset.pattern.permute.xlu0 0
    %76 = vperm.xlu0 %75, %v31
    %v77 = vpop.permute.xlu0 %76
    %78 = vset.pattern.permute.xlu0 0
    %79 = vperm.xlu0 %78, %v32
    %v80 = vpop.permute.xlu0 %79
    %81 = vset.pattern.permute.xlu0 0
    %82 = vperm.xlu0 %81, %v33
    %v83 = vpop.permute.xlu0 %82
    %84 = vset.pattern.permute.xlu0 0
    %85 = vperm.xlu0 %84, %v34
    %v86 = vpop.permute.xlu0 %85
    %87 = vset.pattern.permute.xlu0 0
    %88 = vperm.xlu0 %87, %v35
    %v89 = vpop.permute.xlu0 %88
    %90 = vset.pattern.permute.xlu0 0
    %91 = vperm.xlu0 %90, %v36
    %v92 = vpop.permute.xlu0 %91
    %93 = vset.pattern.permute.xlu0 0
    %94 = vperm.xlu0 %93, %v37
    %v95 = vpop.permute.xlu0 %94
    %96 = vset.pattern.permute.xlu0 0
    %97 = vperm.xlu0 %96, %v38
    %v98 = vpop.permute.xlu0 %97
    %99 = vset.pattern.permute.xlu0 0
    %100 = vperm.xlu0 %99, %v39
    %v101 = vpop.permute.xlu0 %100
    %102 = vset.pattern.permute.xlu0 0
    %103 = vperm.xlu0 %102, %v40
    %v104 = vpop.permute.xlu0 %103
    %105 = vset.pattern.permute.xlu0 0
    %106 = vperm.xlu0 %105, %v41
    %v107 = vpop.permute.xlu0 %106
    %vm108 = vcmp.eq.s32.totalorder %v59, %v62
    %vm109 = vcmp.eq.s32.totalorder %v59, %v65
    %vm110 = vcmp.eq.s32.totalorder %v59, %v68
    %vm111 = vcmp.eq.s32.totalorder %v59, %v71
    %vm112 = vcmp.eq.s32.totalorder %v59, %v74
    %vm113 = vcmp.eq.s32.totalorder %v59, %v77
    %vm114 = vcmp.eq.s32.totalorder %v59, %v80
    %vm115 = vcmp.eq.s32.totalorder %v59, %v83
    %vm116 = vcmp.eq.s32.totalorder %v59, %v86
    %vm117 = vcmp.eq.s32.totalorder %v59, %v89
    %vm118 = vcmp.eq.s32.totalorder %v59, %v92
    %vm119 = vcmp.eq.s32.totalorder %v59, %v95
    %vm120 = vcmp.eq.s32.totalorder %v59, %v98
    %vm121 = vcmp.eq.s32.totalorder %v59, %v101
    %vm122 = vcmp.eq.s32.totalorder %v59, %v104
    %vm123 = vcmp.eq.s32.totalorder %v59, %v107
    %v124 = vsel %vm108, 1.0, 0.0
    %v125 = vsel %vm109, 1.0, 0.0
    %v126 = vsel %vm110, 1.0, 0.0
    %v127 = vsel %vm111, 1.0, 0.0
    %v128 = vsel %vm112, 1.0, 0.0
    %v129 = vsel %vm113, 1.0, 0.0
    %v130 = vsel %vm114, 1.0, 0.0
    %v131 = vsel %vm115, 1.0, 0.0
    %v132 = vsel %vm116, 1.0, 0.0
    %v133 = vsel %vm117, 1.0, 0.0
    %v134 = vsel %vm118, 1.0, 0.0
    %v135 = vsel %vm119, 1.0, 0.0
    %v136 = vsel %vm120, 1.0, 0.0
    %v137 = vsel %vm121, 1.0, 0.0
    %v138 = vsel %vm122, 1.0, 0.0
    %v139 = vsel %vm123, 1.0, 0.0
    %v140 = vpack.c.bf16 %v125, %v124
    %v141 = vpack.c.bf16 %v127, %v126
    %v142 = vpack.c.bf16 %v129, %v128
    %v143 = vpack.c.bf16 %v131, %v130
    %v144 = vpack.c.bf16 %v133, %v132
    %v145 = vpack.c.bf16 %v135, %v134
    %v146 = vpack.c.bf16 %v137, %v136
    %v147 = vpack.c.bf16 %v139, %v138
    %v148 = vld [vmem:[%s2] sm:$0xf]
    %v149 = vld [vmem:[%s2 + $0x4] sm:$0xf]
    %v150 = vld [vmem:[%s2 + $0x8] sm:$0xf]
    %v151 = vld [vmem:[%s2 + $0xc] sm:$0xf]
    %v152 = vld [vmem:[%s2 + $0x10] sm:$0xf]
    %v153 = vld [vmem:[%s2 + $0x14] sm:$0xf]
    %v154 = vld [vmem:[%s2 + $0x18] sm:$0xf]
    %v155 = vld [vmem:[%s2 + $0x1c] sm:$0xf]
    %v156 = vld [vmem:[%s2 + $0x20] sm:$0xf]
    %v157 = vld [vmem:[%s2 + $0x24] sm:$0xf]
    %v158 = vld [vmem:[%s2 + $0x28] sm:$0xf]
    %v159 = vld [vmem:[%s2 + $0x2c] sm:$0xf]
    %v160 = vld [vmem:[%s2 + $0x30] sm:$0xf]
    %v161 = vld [vmem:[%s2 + $0x34] sm:$0xf]
    %v162 = vld [vmem:[%s2 + $0x38] sm:$0xf]
    %v163 = vld [vmem:[%s2 + $0x3c] sm:$0xf]
    %v180 = vunpack.c.l.b16 %v148
    %v181 = vunpack.c.l.b16 %v149
    %v182 = vunpack.c.l.b16 %v150
    %v183 = vunpack.c.l.b16 %v151
    %v184 = vunpack.c.l.b16 %v152
    %v185 = vunpack.c.l.b16 %v153
    %v186 = vunpack.c.l.b16 %v154
    %v187 = vunpack.c.l.b16 %v155
    %v188 = vunpack.c.l.b16 %v156
    %v189 = vunpack.c.l.b16 %v157
    %v190 = vunpack.c.l.b16 %v158
    %v191 = vunpack.c.l.b16 %v159
    %v192 = vunpack.c.l.b16 %v160
    %v193 = vunpack.c.l.b16 %v161
    %v194 = vunpack.c.l.b16 %v162
    %v195 = vunpack.c.l.b16 %v163
    %v196 = vpack.c.b16 %v181, %v180
    %v197 = vpack.c.b16 %v183, %v182
    %v198 = vpack.c.b16 %v185, %v184
    %v199 = vpack.c.b16 %v187, %v186
    %v200 = vpack.c.b16 %v189, %v188
    %v201 = vpack.c.b16 %v191, %v190
    %v202 = vpack.c.b16 %v193, %v192
    %v203 = vpack.c.b16 %v195, %v194
    %212 = vmatprep.subr.bf16.mxu0 0
    %213 = vmatpush1.bf16.msra.mxu0 %v196
    %214 = vmatprep.subr.bf16.mxu0 0
    %215 = vmatpush1.bf16.msra.mxu0 %v197
    %216 = vmatprep.subr.bf16.mxu0 0
    %217 = vmatpush1.bf16.msra.mxu0 %v198
    %218 = vmatprep.subr.bf16.mxu0 0
    %219 = vmatpush1.bf16.msra.mxu0 %v199
    %220 = vmatprep.subr.bf16.mxu0 0
    %221 = vmatpush1.bf16.msra.mxu0 %v200
    %222 = vmatprep.subr.bf16.mxu0 0
    %223 = vmatpush1.bf16.msra.mxu0 %v201
    %224 = vmatprep.subr.bf16.mxu0 0
    %225 = vmatpush1.bf16.msra.mxu0 %v202
    %226 = vmatprep.subr.bf16.mxu0 0
    %227 = vmatpush1.bf16.msra.mxu0 %v203
    %228 = vmatprep.subr.bf16.mxu0 0
    %229 = vmatpush1.bf16.msra.mxu0 0
    %230 = vmatprep.subr.bf16.mxu0 0
    %231 = vmatpush1.bf16.msra.mxu0 0
    %232 = vmatprep.subr.bf16.mxu0 0
    %233 = vmatpush1.bf16.msra.mxu0 0
    %234 = vmatprep.subr.bf16.mxu0 0
    %235 = vmatpush1.bf16.msra.mxu0 0
    %236 = vmatprep.subr.bf16.mxu0 0
    %237 = vmatpush1.bf16.msra.mxu0 0
    %238 = vmatprep.subr.bf16.mxu0 0
    %239 = vmatpush1.bf16.msra.mxu0 0
    %240 = vmatprep.subr.bf16.mxu0 0
    %241 = vmatpush1.bf16.msra.mxu0 0
    %242 = vmatprep.subr.bf16.mxu0 0
    %243 = vmatpush1.bf16.msra.mxu0 0
    %244 = vmatprep.mubr.bf16.mxu0 0
    %245 = vmatmul.mubr.bf16.gmra.mrb[0].mxu0 %v140
    %v246 = vpop.f32.mrb[0].mxu0
    %v247 = vadd.f32 0.0, %v246
    %v248 = vpop.f32.mrb[0].mxu0
    %v249 = vpop.f32.mrb[0].mxu0
    %v250 = vadd.f32 0.0, %v249
    %v251 = vpop.f32.mrb[0].mxu0
    %252 = vmatprep.mubr.bf16.mxu0 0
    %253 = vmatmul.mubr.bf16.gmra.mrb[0].mxu0 %v141
    %v254 = vpop.f32.mrb[0].mxu0
    %v255 = vadd.f32 0.0, %v254
    %v256 = vpop.f32.mrb[0].mxu0
    %v257 = vpop.f32.mrb[0].mxu0
    %v258 = vadd.f32 0.0, %v257
    %v259 = vpop.f32.mrb[0].mxu0
    %260 = vmatprep.mubr.bf16.mxu0 0
    %261 = vmatmul.mubr.bf16.gmra.mrb[0].mxu0 %v142
    %v262 = vpop.f32.mrb[0].mxu0
    %v263 = vadd.f32 0.0, %v262
    %v264 = vpop.f32.mrb[0].mxu0
    %v265 = vpop.f32.mrb[0].mxu0
    %v266 = vadd.f32 0.0, %v265
    %v267 = vpop.f32.mrb[0].mxu0
    %268 = vmatprep.mubr.bf16.mxu0 0
    %269 = vmatmul.mubr.bf16.gmra.mrb[0].mxu0 %v143
    %v270 = vpop.f32.mrb[0].mxu0
    %v271 = vadd.f32 0.0, %v270
    %v272 = vpop.f32.mrb[0].mxu0
    %v273 = vpop.f32.mrb[0].mxu0
    %v274 = vadd.f32 0.0, %v273
    %v275 = vpop.f32.mrb[0].mxu0
    %276 = vmatprep.mubr.bf16.mxu0 0
    %277 = vmatmul.mubr.bf16.gmra.mrb[0].mxu0 %v144
    %v278 = vpop.f32.mrb[0].mxu0
    %v279 = vadd.f32 0.0, %v278
    %v280 = vpop.f32.mrb[0].mxu0
    %v281 = vpop.f32.mrb[0].mxu0
    %v282 = vadd.f32 0.0, %v281
    %v283 = vpop.f32.mrb[0].mxu0
    %284 = vmatprep.mubr.bf16.mxu0 0
    %285 = vmatmul.mubr.bf16.gmra.mrb[0].mxu0 %v145
    %v286 = vpop.f32.mrb[0].mxu0
    %v287 = vadd.f32 0.0, %v286
    %v288 = vpop.f32.mrb[0].mxu0
    %v289 = vpop.f32.mrb[0].mxu0
    %v290 = vadd.f32 0.0, %v289
    %v291 = vpop.f32.mrb[0].mxu0
    %292 = vmatprep.mubr.bf16.mxu0 0
    %293 = vmatmul.mubr.bf16.gmra.mrb[0].mxu0 %v146
    %v294 = vpop.f32.mrb[0].mxu0
    %v295 = vadd.f32 0.0, %v294
    %v296 = vpop.f32.mrb[0].mxu0
    %v297 = vpop.f32.mrb[0].mxu0
    %v298 = vadd.f32 0.0, %v297
    %v299 = vpop.f32.mrb[0].mxu0
    %300 = vmatprep.mubr.bf16.mxu0 0
    %301 = vmatmul.mubr.bf16.gmra.mrb[0].mxu0 %v147
    %v302 = vpop.f32.mrb[0].mxu0
    %v303 = vadd.f32 0.0, %v302
    %v304 = vpop.f32.mrb[0].mxu0
    %v305 = vpop.f32.mrb[0].mxu0
    %v306 = vadd.f32 0.0, %v305
    %v307 = vpop.f32.mrb[0].mxu0
    %308 = vdwg.mxu0
    %v309 = vpack.c.bf16 %v250, %v247
    %v310 = vpack.c.bf16 %v258, %v255
    %v311 = vpack.c.bf16 %v266, %v263
    %v312 = vpack.c.bf16 %v274, %v271
    %v313 = vpack.c.bf16 %v282, %v279
    %v314 = vpack.c.bf16 %v290, %v287
    %v315 = vpack.c.bf16 %v298, %v295
    %v316 = vpack.c.bf16 %v306, %v303
    %v317 = vld [vmem:[%s3] sm:$0xf]
    %v318 = vld [vmem:[%s3 + $0x4] sm:$0xf]
    %v319 = vld [vmem:[%s3 + $0x8] sm:$0xf]
    %v320 = vld [vmem:[%s3 + $0xc] sm:$0xf]
    %v321 = vld [vmem:[%s4] sm:$0x1]
    %v323 = vlaneseq
    %v324 = vshrl.u32 %v323, 7
    %v325 = vsub.s32 0, %v324
    %v326 = vrot.slane %v321, %v325
    %v332 = vunpack.c.l.b16 %v317
    %v333 = vunpack.c.l.b16 %v318
    %v334 = vunpack.c.l.b16 %v319
    %v335 = vunpack.c.l.b16 %v320
    %v336 = vpack.c.b16 %v333, %v332
    %v337 = vpack.c.b16 %v335, %v334
    %vm340 = vcmask 261120
    %v342 = vsel %vm340, %v309, 0
    %v345 = vsel %vm340, %v310, 0
    %v348 = vsel %vm340, %v311, 0
    %v351 = vsel %vm340, %v312, 0
    %v354 = vsel %vm340, %v313, 0
    %v357 = vsel %vm340, %v314, 0
    %v360 = vsel %vm340, %v315, 0
    %v363 = vsel %vm340, %v316, 0
    %365 = vmatprep.subr.bf16.mxu0 0
    %366 = vmatpush1.bf16.msra.mxu0 %v336
    %367 = vmatprep.subr.bf16.mxu0 0
    %368 = vmatpush1.bf16.msra.mxu0 %v337
    %369 = vmatprep.subr.bf16.mxu0 0
    %370 = vmatpush1.bf16.msra.mxu0 0
    %371 = vmatprep.subr.bf16.mxu0 0
    %372 = vmatpush1.bf16.msra.mxu0 0
    %373 = vmatprep.subr.bf16.mxu0 0
    %374 = vmatpush1.bf16.msra.mxu0 0
    %375 = vmatprep.subr.bf16.mxu0 0
    %376 = vmatpush1.bf16.msra.mxu0 0
    %377 = vmatprep.subr.bf16.mxu0 0
    %378 = vmatpush1.bf16.msra.mxu0 0
    %379 = vmatprep.subr.bf16.mxu0 0
    %380 = vmatpush1.bf16.msra.mxu0 0
    %381 = vmatprep.subr.bf16.mxu0 0
    %382 = vmatpush1.bf16.msra.mxu0 0
    %383 = vmatprep.subr.bf16.mxu0 0
    %384 = vmatpush1.bf16.msra.mxu0 0
    %385 = vmatprep.subr.bf16.mxu0 0
    %386 = vmatpush1.bf16.msra.mxu0 0
    %387 = vmatprep.subr.bf16.mxu0 0
    %388 = vmatpush1.bf16.msra.mxu0 0
    %389 = vmatprep.subr.bf16.mxu0 0
    %390 = vmatpush1.bf16.msra.mxu0 0
    %391 = vmatprep.subr.bf16.mxu0 0
    %392 = vmatpush1.bf16.msra.mxu0 0
    %393 = vmatprep.subr.bf16.mxu0 0
    %394 = vmatpush1.bf16.msra.mxu0 0
    %395 = vmatprep.subr.bf16.mxu0 0
    %396 = vmatpush1.bf16.msra.mxu0 0
    %397 = vmatprep.mubr.bf16.mxu0 0
    %398 = vmatmul.mubr.bf16.gmra.mrb[0].mxu0 %v342
    %v399 = vpop.f32.mrb[0].mxu0
    %v400 = vadd.f32 %v326, %v399
    %v401 = vpop.f32.mrb[0].mxu0
    %v402 = vpop.f32.mrb[0].mxu0
    %v403 = vadd.f32 %v326, %v402
    %v404 = vpop.f32.mrb[0].mxu0
    %405 = vmatprep.mubr.bf16.mxu0 0
    %406 = vmatmul.mubr.bf16.gmra.mrb[0].mxu0 %v345
    %v407 = vpop.f32.mrb[0].mxu0
    %v408 = vadd.f32 %v326, %v407
    %v409 = vpop.f32.mrb[0].mxu0
    %v410 = vpop.f32.mrb[0].mxu0
    %v411 = vadd.f32 %v326, %v410
    %v412 = vpop.f32.mrb[0].mxu0
    %413 = vmatprep.mubr.bf16.mxu0 0
    %414 = vmatmul.mubr.bf16.gmra.mrb[0].mxu0 %v348
    %v415 = vpop.f32.mrb[0].mxu0
    %v416 = vadd.f32 %v326, %v415
    %v417 = vpop.f32.mrb[0].mxu0
    %v418 = vpop.f32.mrb[0].mxu0
    %v419 = vadd.f32 %v326, %v418
    %v420 = vpop.f32.mrb[0].mxu0
    %421 = vmatprep.mubr.bf16.mxu0 0
    %422 = vmatmul.mubr.bf16.gmra.mrb[0].mxu0 %v351
    %v423 = vpop.f32.mrb[0].mxu0
    %v424 = vadd.f32 %v326, %v423
    %v425 = vpop.f32.mrb[0].mxu0
    %v426 = vpop.f32.mrb[0].mxu0
    %v427 = vadd.f32 %v326, %v426
    %v428 = vpop.f32.mrb[0].mxu0
    %429 = vmatprep.mubr.bf16.mxu0 0
    %430 = vmatmul.mubr.bf16.gmra.mrb[0].mxu0 %v354
    %v431 = vpop.f32.mrb[0].mxu0
    %v432 = vadd.f32 %v326, %v431
    %v433 = vpop.f32.mrb[0].mxu0
    %v434 = vpop.f32.mrb[0].mxu0
    %v435 = vadd.f32 %v326, %v434
    %v436 = vpop.f32.mrb[0].mxu0
    %437 = vmatprep.mubr.bf16.mxu0 0
    %438 = vmatmul.mubr.bf16.gmra.mrb[0].mxu0 %v357
    %v439 = vpop.f32.mrb[0].mxu0
    %v440 = vadd.f32 %v326, %v439
    %v441 = vpop.f32.mrb[0].mxu0
    %v442 = vpop.f32.mrb[0].mxu0
    %v443 = vadd.f32 %v326, %v442
    %v444 = vpop.f32.mrb[0].mxu0
    %445 = vmatprep.mubr.bf16.mxu0 0
    %446 = vmatmul.mubr.bf16.gmra.mrb[0].mxu0 %v360
    %v447 = vpop.f32.mrb[0].mxu0
    %v448 = vadd.f32 %v326, %v447
    %v449 = vpop.f32.mrb[0].mxu0
    %v450 = vpop.f32.mrb[0].mxu0
    %v451 = vadd.f32 %v326, %v450
    %v452 = vpop.f32.mrb[0].mxu0
    %453 = vmatprep.mubr.bf16.mxu0 0
    %454 = vmatmul.mubr.bf16.gmra.mrb[0].mxu0 %v363
    %v455 = vpop.f32.mrb[0].mxu0
    %v456 = vadd.f32 %v326, %v455
    %v457 = vpop.f32.mrb[0].mxu0
    %v458 = vpop.f32.mrb[0].mxu0
    %v459 = vadd.f32 %v326, %v458
    %v460 = vpop.f32.mrb[0].mxu0
    %461 = vdwg.mxu0
    %462 = vst [vmem:[#allocation2] sm:$0xff] %v400
    %463 = vst [vmem:[#allocation2 + $0x8] sm:$0xff] %v403
    %464 = vst [vmem:[#allocation2 + $0x10] sm:$0xff] %v408
    %465 = vst [vmem:[#allocation2 + $0x18] sm:$0xff] %v411
    %466 = vst [vmem:[#allocation2 + $0x20] sm:$0xff] %v416
    %467 = vst [vmem:[#allocation2 + $0x28] sm:$0xff] %v419
    %468 = vst [vmem:[#allocation2 + $0x30] sm:$0xff] %v424
    %469 = vst [vmem:[#allocation2 + $0x38] sm:$0xff] %v427
    %470 = vst [vmem:[#allocation2 + $0x40] sm:$0xff] %v432
    %471 = vst [vmem:[#allocation2 + $0x48] sm:$0xff] %v435
    %472 = vst [vmem:[#allocation2 + $0x50] sm:$0xff] %v440
    %473 = vst [vmem:[#allocation2 + $0x58] sm:$0xff] %v443
    %474 = vst [vmem:[#allocation2 + $0x60] sm:$0xff] %v448
    %475 = vst [vmem:[#allocation2 + $0x68] sm:$0xff] %v451
    %476 = vst [vmem:[#allocation2 + $0x70] sm:$0xff] %v456
    %477 = vst [vmem:[#allocation2 + $0x78] sm:$0xff] %v459
    %vm478 = vcmp.ne.s32.totalorder %v26, 0
    %vm479 = vcmp.ne.s32.totalorder %v27, 0
    %vm480 = vcmp.ne.s32.totalorder %v28, 0
    %vm481 = vcmp.ne.s32.totalorder %v29, 0
    %vm482 = vcmp.ne.s32.totalorder %v30, 0
    %vm483 = vcmp.ne.s32.totalorder %v31, 0
    %vm484 = vcmp.ne.s32.totalorder %v32, 0
    %vm485 = vcmp.ne.s32.totalorder %v33, 0
    %vm486 = vcmp.ne.s32.totalorder %v34, 0
    %vm487 = vcmp.ne.s32.totalorder %v35, 0
    %vm488 = vcmp.ne.s32.totalorder %v36, 0
    %vm489 = vcmp.ne.s32.totalorder %v37, 0
    %vm490 = vcmp.ne.s32.totalorder %v38, 0
    %vm491 = vcmp.ne.s32.totalorder %v39, 0
    %vm492 = vcmp.ne.s32.totalorder %v40, 0
    %vm493 = vcmp.ne.s32.totalorder %v41, 0
    %v494 = vsel %vm478, 1.0, 0.0
    %v495 = vsel %vm479, 1.0, 0.0
    %v496 = vsel %vm480, 1.0, 0.0
    %v497 = vsel %vm481, 1.0, 0.0
    %v498 = vsel %vm482, 1.0, 0.0
    %v499 = vsel %vm483, 1.0, 0.0
    %v500 = vsel %vm484, 1.0, 0.0
    %v501 = vsel %vm485, 1.0, 0.0
    %v502 = vsel %vm486, 1.0, 0.0
    %v503 = vsel %vm487, 1.0, 0.0
    %v504 = vsel %vm488, 1.0, 0.0
    %v505 = vsel %vm489, 1.0, 0.0
    %v506 = vsel %vm490, 1.0, 0.0
    %v507 = vsel %vm491, 1.0, 0.0
    %v508 = vsel %vm492, 1.0, 0.0
    %v509 = vsel %vm493, 1.0, 0.0
    %vm510 = vcmp.eq.s32.totalorder %v42, 1
    %vm511 = vcmp.eq.s32.totalorder %v43, 1
    %vm512 = vcmp.eq.s32.totalorder %v44, 1
    %vm513 = vcmp.eq.s32.totalorder %v45, 1
    %vm514 = vcmp.eq.s32.totalorder %v46, 1
    %vm515 = vcmp.eq.s32.totalorder %v47, 1
    %vm516 = vcmp.eq.s32.totalorder %v48, 1
    %vm517 = vcmp.eq.s32.totalorder %v49, 1
    %vm518 = vcmp.eq.s32.totalorder %v50, 1
    %vm519 = vcmp.eq.s32.totalorder %v51, 1
    %vm520 = vcmp.eq.s32.totalorder %v52, 1
    %vm521 = vcmp.eq.s32.totalorder %v53, 1
    %vm522 = vcmp.eq.s32.totalorder %v54, 1
    %vm523 = vcmp.eq.s32.totalorder %v55, 1
    %vm524 = vcmp.eq.s32.totalorder %v56, 1
    %vm525 = vcmp.eq.s32.totalorder %v57, 1
    %v526 = vsel %vm510, 1.0, 0.0
    %v527 = vsel %vm511, 1.0, 0.0
    %v528 = vsel %vm512, 1.0, 0.0
    %v529 = vsel %vm513, 1.0, 0.0
    %v530 = vsel %vm514, 1.0, 0.0
    %v531 = vsel %vm515, 1.0, 0.0
    %v532 = vsel %vm516, 1.0, 0.0
    %v533 = vsel %vm517, 1.0, 0.0
    %v534 = vsel %vm518, 1.0, 0.0
    %v535 = vsel %vm519, 1.0, 0.0
    %v536 = vsel %vm520, 1.0, 0.0
    %v537 = vsel %vm521, 1.0, 0.0
    %v538 = vsel %vm522, 1.0, 0.0
    %v539 = vsel %vm523, 1.0, 0.0
    %v540 = vsel %vm524, 1.0, 0.0
    %v541 = vsel %vm525, 1.0, 0.0
    %v542 = vadd.f32 %v526, 0.0
    %v543 = vadd.f32 %v527, 0.0
    %v544 = vadd.f32 %v528, 0.0
    %v545 = vadd.f32 %v529, 0.0
    %v546 = vadd.f32 %v530, 0.0
    %v547 = vadd.f32 %v531, 0.0
    %v548 = vadd.f32 %v532, 0.0
    %v549 = vadd.f32 %v533, 0.0
    %v550 = vadd.f32 %v534, 0.0
    %v551 = vadd.f32 %v535, 0.0
    %v552 = vadd.f32 %v536, 0.0
    %v553 = vadd.f32 %v537, 0.0
    %v554 = vadd.f32 %v538, 0.0
    %v555 = vadd.f32 %v539, 0.0
    %v556 = vadd.f32 %v540, 0.0
    %v557 = vadd.f32 %v541, 0.0
    %v558 = vmax.f32 %v400, 0.0
    %v559 = vmax.f32 %v403, 0.0
    %v560 = vmax.f32 %v408, 0.0
    %v561 = vmax.f32 %v411, 0.0
    %v562 = vmax.f32 %v416, 0.0
    %v563 = vmax.f32 %v419, 0.0
    %v564 = vmax.f32 %v424, 0.0
    %v565 = vmax.f32 %v427, 0.0
    %v566 = vmax.f32 %v432, 0.0
    %v567 = vmax.f32 %v435, 0.0
    %v568 = vmax.f32 %v440, 0.0
    %v569 = vmax.f32 %v443, 0.0
    %v570 = vmax.f32 %v448, 0.0
    %v571 = vmax.f32 %v451, 0.0
    %v572 = vmax.f32 %v456, 0.0
    %v573 = vmax.f32 %v459, 0.0
    %v574 = vmul.f32 %v400, %v542
    %v575 = vmul.f32 %v403, %v543
    %v576 = vmul.f32 %v408, %v544
    %v577 = vmul.f32 %v411, %v545
    %v578 = vmul.f32 %v416, %v546
    %v579 = vmul.f32 %v419, %v547
    %v580 = vmul.f32 %v424, %v548
    %v581 = vmul.f32 %v427, %v549
    %v582 = vmul.f32 %v432, %v550
    %v583 = vmul.f32 %v435, %v551
    %v584 = vmul.f32 %v440, %v552
    %v585 = vmul.f32 %v443, %v553
    %v586 = vmul.f32 %v448, %v554
    %v587 = vmul.f32 %v451, %v555
    %v588 = vmul.f32 %v456, %v556
    %v589 = vmul.f32 %v459, %v557
    %v590 = vsub.f32 %v558, %v574
    %v591 = vsub.f32 %v559, %v575
    %v592 = vsub.f32 %v560, %v576
    %v593 = vsub.f32 %v561, %v577
    %v594 = vsub.f32 %v562, %v578
    %v595 = vsub.f32 %v563, %v579
    %v596 = vsub.f32 %v564, %v580
    %v597 = vsub.f32 %v565, %v581
    %v598 = vsub.f32 %v566, %v582
    %v599 = vsub.f32 %v567, %v583
    %v600 = vsub.f32 %v568, %v584
    %v601 = vsub.f32 %v569, %v585
    %v602 = vsub.f32 %v570, %v586
    %v603 = vsub.f32 %v571, %v587
    %v604 = vsub.f32 %v572, %v588
    %v605 = vsub.f32 %v573, %v589
    %v606 = vand.u32 2147483647, %v400
    %v607 = vand.u32 2147483647, %v403
    %v608 = vand.u32 2147483647, %v408
    %v609 = vand.u32 2147483647, %v411
    %v610 = vand.u32 2147483647, %v416
    %v611 = vand.u32 2147483647, %v419
    %v612 = vand.u32 2147483647, %v424
    %v613 = vand.u32 2147483647, %v427
    %v614 = vand.u32 2147483647, %v432
    %v615 = vand.u32 2147483647, %v435
    %v616 = vand.u32 2147483647, %v440
    %v617 = vand.u32 2147483647, %v443
    %v618 = vand.u32 2147483647, %v448
    %v619 = vand.u32 2147483647, %v451
    %v620 = vand.u32 2147483647, %v456
    %v621 = vand.u32 2147483647, %v459
    %v622 = vsub.f32 0.0, %v606
    %v623 = vsub.f32 0.0, %v607
    %v624 = vsub.f32 0.0, %v608
    %v625 = vsub.f32 0.0, %v609
    %v626 = vsub.f32 0.0, %v610
    %v627 = vsub.f32 0.0, %v611
    %v628 = vsub.f32 0.0, %v612
    %v629 = vsub.f32 0.0, %v613
    %v630 = vsub.f32 0.0, %v614
    %v631 = vsub.f32 0.0, %v615
    %v632 = vsub.f32 0.0, %v616
    %v633 = vsub.f32 0.0, %v617
    %v634 = vsub.f32 0.0, %v618
    %v635 = vsub.f32 0.0, %v619
    %v636 = vsub.f32 0.0, %v620
    %v637 = vsub.f32 0.0, %v621
    %v638 = vmul.f32 %v622, 1.442695
    %v639 = vpow.pop %v638
    %v640 = vmul.f32 %v623, 1.442695
    %v641 = vpow.pop %v640
    %v642 = vmul.f32 %v624, 1.442695
    %v643 = vpow.pop %v642
    %v644 = vmul.f32 %v625, 1.442695
    %v645 = vpow.pop %v644
    %v646 = vmul.f32 %v626, 1.442695
    %v647 = vpow.pop %v646
    %v648 = vmul.f32 %v627, 1.442695
    %v649 = vpow.pop %v648
    %v650 = vmul.f32 %v628, 1.442695
    %v651 = vpow.pop %v650
    %v652 = vmul.f32 %v629, 1.442695
    %v653 = vpow.pop %v652
    %v654 = vmul.f32 %v630, 1.442695
    %v655 = vpow.pop %v654
    %v656 = vmul.f32 %v631, 1.442695
    %v657 = vpow.pop %v656
    %v658 = vmul.f32 %v632, 1.442695
    %v659 = vpow.pop %v658
    %v660 = vmul.f32 %v633, 1.442695
    %v661 = vpow.pop %v660
    %v662 = vmul.f32 %v634, 1.442695
    %v663 = vpow.pop %v662
    %v664 = vmul.f32 %v635, 1.442695
    %v665 = vpow.pop %v664
    %v666 = vmul.f32 %v636, 1.442695
    %v667 = vpow.pop %v666
    %v668 = vmul.f32 %v637, 1.442695
    %v669 = vpow.pop %v668
    %v670 = vadd.f32 %v639, 1.0
    %v671 = vlog2.pop %v670
    %v672 = vmul.f32 %v671, 0.6931472
    %v673 = vmul.f32 -0.5, %v639
    %v674 = vadd.f32 %v673, 1.0
    %v675 = vmul.f32 %v674, %v639
    %v676 = vand.u32 2147483647, %v639
    %vm677 = vcmp.lt.f32.partialorder %v676, 0.0004427343
    %v678 = vsel %vm677, %v675, %v672
    %v679 = vadd.f32 %v641, 1.0
    %v680 = vlog2.pop %v679
    %v681 = vmul.f32 %v680, 0.6931472
    %v682 = vmul.f32 -0.5, %v641
    %v683 = vadd.f32 %v682, 1.0
    %v684 = vmul.f32 %v683, %v641
    %v685 = vand.u32 2147483647, %v641
    %vm686 = vcmp.lt.f32.partialorder %v685, 0.0004427343
    %v687 = vsel %vm686, %v684, %v681
    %v688 = vadd.f32 %v643, 1.0
    %v689 = vlog2.pop %v688
    %v690 = vmul.f32 %v689, 0.6931472
    %v691 = vmul.f32 -0.5, %v643
    %v692 = vadd.f32 %v691, 1.0
    %v693 = vmul.f32 %v692, %v643
    %v694 = vand.u32 2147483647, %v643
    %vm695 = vcmp.lt.f32.partialorder %v694, 0.0004427343
    %v696 = vsel %vm695, %v693, %v690
    %v697 = vadd.f32 %v645, 1.0
    %v698 = vlog2.pop %v697
    %v699 = vmul.f32 %v698, 0.6931472
    %v700 = vmul.f32 -0.5, %v645
    %v701 = vadd.f32 %v700, 1.0
    %v702 = vmul.f32 %v701, %v645
    %v703 = vand.u32 2147483647, %v645
    %vm704 = vcmp.lt.f32.partialorder %v703, 0.0004427343
    %v705 = vsel %vm704, %v702, %v699
    %v706 = vadd.f32 %v647, 1.0
    %v707 = vlog2.pop %v706
    %v708 = vmul.f32 %v707, 0.6931472
    %v709 = vmul.f32 -0.5, %v647
    %v710 = vadd.f32 %v709, 1.0
    %v711 = vmul.f32 %v710, %v647
    %v712 = vand.u32 2147483647, %v647
    %vm713 = vcmp.lt.f32.partialorder %v712, 0.0004427343
    %v714 = vsel %vm713, %v711, %v708
    %v715 = vadd.f32 %v649, 1.0
    %v716 = vlog2.pop %v715
    %v717 = vmul.f32 %v716, 0.6931472
    %v718 = vmul.f32 -0.5, %v649
    %v719 = vadd.f32 %v718, 1.0
    %v720 = vmul.f32 %v719, %v649
    %v721 = vand.u32 2147483647, %v649
    %vm722 = vcmp.lt.f32.partialorder %v721, 0.0004427343
    %v723 = vsel %vm722, %v720, %v717
    %v724 = vadd.f32 %v651, 1.0
    %v725 = vlog2.pop %v724
    %v726 = vmul.f32 %v725, 0.6931472
    %v727 = vmul.f32 -0.5, %v651
    %v728 = vadd.f32 %v727, 1.0
    %v729 = vmul.f32 %v728, %v651
    %v730 = vand.u32 2147483647, %v651
    %vm731 = vcmp.lt.f32.partialorder %v730, 0.0004427343
    %v732 = vsel %vm731, %v729, %v726
    %v733 = vadd.f32 %v653, 1.0
    %v734 = vlog2.pop %v733
    %v735 = vmul.f32 %v734, 0.6931472
    %v736 = vmul.f32 -0.5, %v653
    %v737 = vadd.f32 %v736, 1.0
    %v738 = vmul.f32 %v737, %v653
    %v739 = vand.u32 2147483647, %v653
    %vm740 = vcmp.lt.f32.partialorder %v739, 0.0004427343
    %v741 = vsel %vm740, %v738, %v735
    %v742 = vadd.f32 %v655, 1.0
    %v743 = vlog2.pop %v742
    %v744 = vmul.f32 %v743, 0.6931472
    %v745 = vmul.f32 -0.5, %v655
    %v746 = vadd.f32 %v745, 1.0
    %v747 = vmul.f32 %v746, %v655
    %v748 = vand.u32 2147483647, %v655
    %vm749 = vcmp.lt.f32.partialorder %v748, 0.0004427343
    %v750 = vsel %vm749, %v747, %v744
    %v751 = vadd.f32 %v657, 1.0
    %v752 = vlog2.pop %v751
    %v753 = vmul.f32 %v752, 0.6931472
    %v754 = vmul.f32 -0.5, %v657
    %v755 = vadd.f32 %v754, 1.0
    %v756 = vmul.f32 %v755, %v657
    %v757 = vand.u32 2147483647, %v657
    %vm758 = vcmp.lt.f32.partialorder %v757, 0.0004427343
    %v759 = vsel %vm758, %v756, %v753
    %v760 = vadd.f32 %v659, 1.0
    %v761 = vlog2.pop %v760
    %v762 = vmul.f32 %v761, 0.6931472
    %v763 = vmul.f32 -0.5, %v659
    %v764 = vadd.f32 %v763, 1.0
    %v765 = vmul.f32 %v764, %v659
    %v766 = vand.u32 2147483647, %v659
    %vm767 = vcmp.lt.f32.partialorder %v766, 0.0004427343
    %v768 = vsel %vm767, %v765, %v762
    %v769 = vadd.f32 %v661, 1.0
    %v770 = vlog2.pop %v769
    %v771 = vmul.f32 %v770, 0.6931472
    %v772 = vmul.f32 -0.5, %v661
    %v773 = vadd.f32 %v772, 1.0
    %v774 = vmul.f32 %v773, %v661
    %v775 = vand.u32 2147483647, %v661
    %vm776 = vcmp.lt.f32.partialorder %v775, 0.0004427343
    %v777 = vsel %vm776, %v774, %v771
    %v778 = vadd.f32 %v663, 1.0
    %v779 = vlog2.pop %v778
    %v780 = vmul.f32 %v779, 0.6931472
    %v781 = vmul.f32 -0.5, %v663
    %v782 = vadd.f32 %v781, 1.0
    %v783 = vmul.f32 %v782, %v663
    %v784 = vand.u32 2147483647, %v663
    %vm785 = vcmp.lt.f32.partialorder %v784, 0.0004427343
    %v786 = vsel %vm785, %v783, %v780
    %v787 = vadd.f32 %v665, 1.0
    %v788 = vlog2.pop %v787
    %v789 = vmul.f32 %v788, 0.6931472
    %v790 = vmul.f32 -0.5, %v665
    %v791 = vadd.f32 %v790, 1.0
    %v792 = vmul.f32 %v791, %v665
    %v793 = vand.u32 2147483647, %v665
    %vm794 = vcmp.lt.f32.partialorder %v793, 0.0004427343
    %v795 = vsel %vm794, %v792, %v789
    %v796 = vadd.f32 %v667, 1.0
    %v797 = vlog2.pop %v796
    %v798 = vmul.f32 %v797, 0.6931472
    %v799 = vmul.f32 -0.5, %v667
    %v800 = vadd.f32 %v799, 1.0
    %v801 = vmul.f32 %v800, %v667
    %v802 = vand.u32 2147483647, %v667
    %vm803 = vcmp.lt.f32.partialorder %v802, 0.0004427343
    %v804 = vsel %vm803, %v801, %v798
    %v805 = vadd.f32 %v669, 1.0
    %v806 = vlog2.pop %v805
    %v807 = vmul.f32 %v806, 0.6931472
    %v808 = vmul.f32 -0.5, %v669
    %v809 = vadd.f32 %v808, 1.0
    %v810 = vmul.f32 %v809, %v669
    %v811 = vand.u32 2147483647, %v669
    %vm812 = vcmp.lt.f32.partialorder %v811, 0.0004427343
    %v813 = vsel %vm812, %v810, %v807
    %v814 = vadd.f32 %v590, %v678
    %v815 = vadd.f32 %v591, %v687
    %v816 = vadd.f32 %v592, %v696
    %v817 = vadd.f32 %v593, %v705
    %v818 = vadd.f32 %v594, %v714
    %v819 = vadd.f32 %v595, %v723
    %v820 = vadd.f32 %v596, %v732
    %v821 = vadd.f32 %v597, %v741
    %v822 = vadd.f32 %v598, %v750
    %v823 = vadd.f32 %v599, %v759
    %v824 = vadd.f32 %v600, %v768
    %v825 = vadd.f32 %v601, %v777
    %v826 = vadd.f32 %v602, %v786
    %v827 = vadd.f32 %v603, %v795
    %v828 = vadd.f32 %v604, %v804
    %v829 = vadd.f32 %v605, %v813
    %v830 = vmul.f32 %v814, %v494
    %v831 = vmul.f32 %v815, %v495
    %v832 = vmul.f32 %v816, %v496
    %v833 = vmul.f32 %v817, %v497
    %v834 = vmul.f32 %v818, %v498
    %v835 = vmul.f32 %v819, %v499
    %v836 = vmul.f32 %v820, %v500
    %v837 = vmul.f32 %v821, %v501
    %v838 = vmul.f32 %v822, %v502
    %v839 = vmul.f32 %v823, %v503
    %v840 = vmul.f32 %v824, %v504
    %v841 = vmul.f32 %v825, %v505
    %v842 = vmul.f32 %v826, %v506
    %v843 = vmul.f32 %v827, %v507
    %v844 = vmul.f32 %v828, %v508
    %v845 = vmul.f32 %v829, %v509
    %vm846 = vcmask 7168
    %v847 = vsel %vm846, %v830, 0.0
    %v848 = vsel %vm846, %v831, 0.0
    %v849 = vadd.f32 %v847, %v848
    %v850 = vsel %vm846, %v832, 0.0
    %v851 = vadd.f32 %v849, %v850
    %v852 = vsel %vm846, %v833, 0.0
    %v853 = vadd.f32 %v851, %v852
    %v854 = vsel %vm846, %v834, 0.0
    %v855 = vadd.f32 %v853, %v854
    %v856 = vsel %vm846, %v835, 0.0
    %v857 = vadd.f32 %v855, %v856
    %v858 = vsel %vm846, %v836, 0.0
    %v859 = vadd.f32 %v857, %v858
    %v860 = vsel %vm846, %v837, 0.0
    %v861 = vadd.f32 %v859, %v860
    %v862 = vsel %vm846, %v838, 0.0
    %v863 = vadd.f32 %v861, %v862
    %v864 = vsel %vm846, %v839, 0.0
    %v865 = vadd.f32 %v863, %v864
    %v866 = vsel %vm846, %v840, 0.0
    %v867 = vadd.f32 %v865, %v866
    %v868 = vsel %vm846, %v841, 0.0
    %v869 = vadd.f32 %v867, %v868
    %v870 = vsel %vm846, %v842, 0.0
    %v871 = vadd.f32 %v869, %v870
    %v872 = vsel %vm846, %v843, 0.0
    %v873 = vadd.f32 %v871, %v872
    %v874 = vsel %vm846, %v844, 0.0
    %v875 = vadd.f32 %v873, %v874
    %v876 = vsel %vm846, %v845, 0.0
    %v877 = vadd.f32 %v875, %v876
    %878 = vadd.xlane.f32.xlu0 %v877
    %v879 = vpop.xlane.xlu0 %878
    %v880 = vrot.slane %v879, 4
    %v881 = vadd.f32 %v879, %v880
    %v882 = vrot.slane %v881, 2
    %v883 = vadd.f32 %v881, %v882
    %v884 = vrot.slane %v883, 1
    %v885 = vadd.f32 %v883, %v884
    %s886 = vtos %v885
    %v887 = vstv %s886
    %vm888 = vcmask 0
    %889 = vst.msk [vmem:[#allocation4] sm:$0x1] %vm888, %v887
    %v890 = vsel %vm846, %v494, 0.0
    %v891 = vsel %vm846, %v495, 0.0
    %v892 = vadd.f32 %v890, %v891
    %v893 = vsel %vm846, %v496, 0.0
    %v894 = vadd.f32 %v892, %v893
    %v895 = vsel %vm846, %v497, 0.0
    %v896 = vadd.f32 %v894, %v895
    %v897 = vsel %vm846, %v498, 0.0
    %v898 = vadd.f32 %v896, %v897
    %v899 = vsel %vm846, %v499, 0.0
    %v900 = vadd.f32 %v898, %v899
    %v901 = vsel %vm846, %v500, 0.0
    %v902 = vadd.f32 %v900, %v901
    %v903 = vsel %vm846, %v501, 0.0
    %v904 = vadd.f32 %v902, %v903
    %v905 = vsel %vm846, %v502, 0.0
    %v906 = vadd.f32 %v904, %v905
    %v907 = vsel %vm846, %v503, 0.0
    %v908 = vadd.f32 %v906, %v907
    %v909 = vsel %vm846, %v504, 0.0
    %v910 = vadd.f32 %v908, %v909
    %v911 = vsel %vm846, %v505, 0.0
    %v912 = vadd.f32 %v910, %v911
    %v913 = vsel %vm846, %v506, 0.0
    %v914 = vadd.f32 %v912, %v913
    %v915 = vsel %vm846, %v507, 0.0
    %v916 = vadd.f32 %v914, %v915
    %v917 = vsel %vm846, %v508, 0.0
    %v918 = vadd.f32 %v916, %v917
    %v919 = vsel %vm846, %v509, 0.0
    %v920 = vadd.f32 %v918, %v919
    %921 = vadd.xlane.f32.xlu0 %v920
    %v922 = vpop.xlane.xlu0 %921
    %v923 = vrot.slane %v922, 4
    %v924 = vadd.f32 %v922, %v923
    %v925 = vrot.slane %v924, 2
    %v926 = vadd.f32 %v924, %v925
    %v927 = vrot.slane %v926, 1
    %v928 = vadd.f32 %v926, %v927
    %s929 = vtos %v928
    %v930 = vstv %s929
    %931 = vst.msk [vmem:[#allocation6] sm:$0x1] %vm888, %v930
    // Predicated region
    $region22: #{tpu_custom_call.1} parent=1 // pred_check
      _
    $region23: #{tpu_custom_call.1} parent=1 // pred_check_branch
      %933 = sbr.rel (0) target = $region25
    $region24: #{tpu_custom_call.1} parent=1 // pred_region
      %s935 = ssub.s32 2048, 2048
      %936 = vsyncadd [#allocation3], %s935
      %s937 = sshll.u32 [#allocation2], 4
      %s938 = int_to_ptr.vmem [resolvable:$true] %s937
      %943 = dma.vmem_to_hbm [thread:$0]  %s938, 2048, %s5, [#allocation3], 128, 128, 8
    $region25: #{tpu_custom_call.1} parent=1 // pred_fallthru
      _
    // Predicated region
    $region26: #{tpu_custom_call.1} parent=1 // pred_check
      _
    $region27: #{tpu_custom_call.1} parent=1 // pred_check_branch
      %945 = sbr.rel (0) target = $region29
    $region28: #{tpu_custom_call.1} parent=1 // pred_region
      %s947 = ssub.s32 16, 16
      %948 = vsyncadd [#allocation5], %s947
      %s950 = sshll.u32 [#allocation4], 4
      %s951 = int_to_ptr.vmem [resolvable:$true] %s950
      %953 = dma.vmem_to_hbm [thread:$0]  %s951, 16, %s6, [#allocation5]
    $region29: #{tpu_custom_call.1} parent=1 // pred_fallthru
      _
    // Predicated region
    $region30: #{tpu_custom_call.1} parent=1 // pred_check
      _
    $region31: #{tpu_custom_call.1} parent=1 // pred_check_branch
      %955 = sbr.rel (0) target = $region33
    $region32: #{tpu_custom_call.1} parent=1 // pred_region
      %s957 = ssub.s32 16, 16
      %958 = vsyncadd [#allocation5], %s957
      %s960 = sshll.u32 [#allocation6], 4
      %s961 = int_to_ptr.vmem [resolvable:$true] %s960
      %963 = dma.vmem_to_hbm [thread:$0]  %s961, 16, %s7, [#allocation5]
    $region33: #{tpu_custom_call.1} parent=1 // pred_fallthru
      _
    // Predicated region
    $region34: #{tpu_custom_call.1} parent=1 // pred_check
      _
    $region35: #{tpu_custom_call.1} parent=1 // pred_check_branch
      %965 = sbr.rel (0) target = $region37
    $region36: #{tpu_custom_call.1} parent=1 // pred_region
      %966 = dma.done [#allocation3], 2048
    $region37: #{tpu_custom_call.1} parent=1 // pred_fallthru
      _
    // Predicated region
    $region38: #{tpu_custom_call.1} parent=1 // pred_check
      _
    $region39: #{tpu_custom_call.1} parent=1 // pred_check_branch
      %968 = sbr.rel (0) target = $region41
    $region40: #{tpu_custom_call.1} parent=1 // pred_region
      %969 = dma.done [#allocation5], 16
    $region41: #{tpu_custom_call.1} parent=1 // pred_fallthru
      _
    // Predicated region
    $region42: #{tpu_custom_call.1} parent=1 // pred_check
      _
    $region43: #{tpu_custom_call.1} parent=1 // pred_check_branch
      %971 = sbr.rel (0) target = $region45
    $region44: #{tpu_custom_call.1} parent=1 // pred_region
      %972 = dma.done [#allocation5], 16
    $region45: #{tpu_custom_call.1} parent=1 // pred_fallthru
      _
    %973 = vsyncpa [#allocation3], 1
    %974 = vsyncpa [#allocation5], 1

</llo_original>
